<compile_context>
chip_gen: v7x
topology: tpu7x:2x2x1
jax: 0.10.0
libtpu: 0.0.40
codegen_flags: <defaults>
</compile_context>

<pallas_src>
import functools

import jax
import jax.numpy as jnp
from jax.experimental import pallas as pl
from jax.experimental.pallas import tpu as pltpu

BLOCK_SIZE = 128  # DeepSeek-V3 quantization block size (fixed in the reference code)


# --------------------------------------------------------------------------------------
# Kernel
# --------------------------------------------------------------------------------------
def _fp8_linear_kernel(x_ref, wt_ref, s_ref, b_ref, o_ref, acc_ref, *, kb_per_step):
    """One (TM, TN) output tile; grid axis 2 loops over K in steps of kb_per_step*128.

    x_ref  : (TM, TK_STEP)            bf16 activations
    wt_ref : (TK_STEP, TN)            fp8 (or bf16) weight, already (K, N)-major
    s_ref  : (kb_per_step, 1, TN)     f32 per-128-column-block scale rows for this K step
    b_ref  : (1, TN)                  f32 bias row
    acc_ref: (TM, TN)                 f32 VMEM accumulator, resident across the K axis
    """
    k = pl.program_id(2)

    @pl.when(k == 0)
    def _():
        acc_ref[...] = jnp.zeros_like(acc_ref)

    # Statically unrolled loop over the 128-wide quantization sub-blocks of this K step.
    # The fp8 -> bf16 upcast is cheap VPU work hidden under the MXU; bf16 x bf16 -> f32
    # accumulation runs on the MXU with a standard (sublane-contracted) layout.
    # TODO(synk): on v7x, feed the e4m3 tile directly to the MXU (native fp8) and skip
    # the upcast; keep the upcast on v5e/v6e which have no fp8 MXU mode.
    step_acc = None
    for b in range(kb_per_step):
        lo = b * BLOCK_SIZE
        xb = x_ref[:, lo:lo + BLOCK_SIZE]                          # (TM, 128) bf16
        wb = wt_ref[lo:lo + BLOCK_SIZE, :].astype(jnp.bfloat16)    # (128, TN) bf16
        partial = jnp.dot(xb, wb, preferred_element_type=jnp.float32)  # (TM, TN) f32
        # One f32 scale per 128-wide output-column block of this sub-block, broadcast
        # over the TM rows.
        # TODO(synk): for very large TM (prefill) fold the scale into the weight tile
        # instead (TN*TK vs TM*TN VALU ops); kept on the partial here for simplicity
        # and exact-match numerics with the previous validated kernel.
        scaled = s_ref[b] * partial
        step_acc = scaled if step_acc is None else step_acc + scaled

    # Single accumulator read-modify-write per grid step.
    acc_ref[...] += step_acc

    @pl.when(k == pl.num_programs(2) - 1)
    def _():
        o_ref[...] = (acc_ref[...] + b_ref[...]).astype(o_ref.dtype)


# --------------------------------------------------------------------------------------
# One-time weight preparation (load time, outside the per-call hot path)
# --------------------------------------------------------------------------------------
def _fp8_probe_kernel(x_ref, o_ref):
    o_ref[...] = x_ref[...].astype(jnp.bfloat16)


def _supports_fp8_weights():
    """Isolated capability probe: can Mosaic hold an e4m3 tile in VMEM and upcast it?

    Keeping the probe separate means the real kernel never runs under a broad
    try/except, so genuine bugs are not silently masked.
    """
    try:
        x = jnp.zeros((8, 128), dtype=jnp.float8_e4m3fn)
        y = pl.pallas_call(
            _fp8_probe_kernel,
            out_shape=jax.ShapeDtypeStruct((8, 128), jnp.bfloat16),
        )(x)
        jax.block_until_ready(y)
        return True
    except Exception:  # noqa: BLE001 - capability probe only
        return False


def prepare_deepseek_v3_linear(weight_q, weight_scale, bias=None, *, allow_fp8_storage=None):
    """One-time repack of the LinearDeepSeekV3 parameters for the Pallas kernel.

      * weight transposed to (K, N) so the in-kernel MXU dot contracts the rhs sublane
        dim directly (no per-tile transpose),
      * per-block scales expanded to lane-dense (K//128, 1, N) f32 rows,
      * bias materialized as a (1, N) f32 row.

    All of this is a pure function of the parameters and runs once at weight-load time,
    not per forward call.
    """
    N, K = weight_q.shape
    assert K % BLOCK_SIZE == 0 and N % BLOCK_SIZE == 0, (
        "in/out features must be multiples of the 128 quant block")

    if allow_fp8_storage is None:
        allow_fp8_storage = _supports_fp8_weights()

    wt = jnp.transpose(weight_q)  # (K, N)
    if wt.dtype == jnp.float8_e4m3fn and not allow_fp8_storage:
        # TODO(synk): on v5e consider int8 block-quantized storage (int8 MXU) instead of
        # bf16 to keep the weight HBM stream halved; bf16 fallback keeps exact fp8 values.
        wt = wt.astype(jnp.bfloat16)

    kb = K // BLOCK_SIZE
    # scale_rows[kb_idx, 0, n] = weight_scale[n // 128, kb_idx]  (lane-dense per-K-block row)
    scale_rows = jnp.repeat(weight_scale.astype(jnp.float32).T, BLOCK_SIZE, axis=1)
    scale_rows = scale_rows.reshape(kb, 1, N)

    if bias is None:
        bias_row = jnp.zeros((1, N), dtype=jnp.float32)
    else:
        bias_row = bias.reshape(1, N).astype(jnp.float32)

    return wt, scale_rows, bias_row


# --------------------------------------------------------------------------------------
# Forward
# --------------------------------------------------------------------------------------
def _pick_tile(dim, candidates):
    for c in candidates:
        if dim % c == 0:
            return c
    raise ValueError(f"dimension {dim} must be divisible by {BLOCK_SIZE}")


def _round_up(x, m):
    return ((x + m - 1) // m) * m


@jax.jit
def linear_deepseek_v3_pallas(x, wt_q, scale_rows, bias_row):
    """y = x @ dequant(weight).T + bias  with the prepared (K, N) weight.

    x:          (..., K)  any float dtype (cast to bf16 for the MXU)
    wt_q:       (K, N)    float8_e4m3fn (preferred) or bf16 holding the fp8 values
    scale_rows: (K//128, 1, N) float32   (from prepare_deepseek_v3_linear)
    bias_row:   (1, N)    float32        (zeros if the layer has no bias)
    """
    orig_shape = x.shape
    K, N = wt_q.shape
    assert orig_shape[-1] == K
    out_dtype = x.dtype

    x2 = x.reshape(-1, K).astype(jnp.bfloat16)
    M = x2.shape[0]

    # ---- tile selection --------------------------------------------------------------
    TK = _pick_tile(K, (512, 256, 128))          # multiple quant blocks per grid step
    TN = _pick_tile(N, (1024, 512, 256, 128))    # lane-dense output slab
    KB_PER_STEP = TK // BLOCK_SIZE

    if M <= 1024:
        # Decode / small prefill: one grid-i step -> the weight streams from HBM exactly
        # once. Pad to a multiple of 16 so the bf16 output writeback is full vregs.
        M_pad = max(16, _round_up(M, 16))
        TM = M_pad
    else:
        M_pad = _round_up(M, 256)
        TM = _pick_tile(M_pad, (1024, 512, 256))
    if M_pad != M:
        x2 = jnp.pad(x2, ((0, M_pad - M), (0, 0)))

    grid = (M_pad // TM, N // TN, K // TK)

    # ---- VMEM budget (double-buffered inputs/outputs + resident accumulator) ----------
    w_itemsize = jnp.dtype(wt_q.dtype).itemsize
    vmem_est = (2 * TM * TK * 2                      # x (bf16)
                + 2 * TK * TN * w_itemsize           # weight tile
                + 2 * KB_PER_STEP * 8 * TN * 4       # scale rows (sublane-padded)
                + 2 * 8 * TN * 4                     # bias row
                + 2 * TM * TN * jnp.dtype(out_dtype).itemsize
                + TM * TN * 4)                       # f32 accumulator scratch
    # Cap well below v7x's 64 MiB physical VMEM; v5e/v6e have more headroom anyway.
    vmem_limit = min(max(vmem_est + (8 << 20), 32 << 20), 48 << 20)

    kernel = functools.partial(_fp8_linear_kernel, kb_per_step=KB_PER_STEP)

    out = pl.pallas_call(
        kernel,
        out_shape=jax.ShapeDtypeStruct((M_pad, N), out_dtype),
        grid_spec=pltpu.PrefetchScalarGridSpec(
            num_scalar_prefetch=0,
            grid=grid,
            in_specs=[
                pl.BlockSpec((TM, TK), lambda i, j, k: (i, k)),              # x tile
                # TODO(synk): for the decode config (grid-i == 1) sweep
                # pipeline_mode=pl.Buffered(3) on this spec to deepen the weight pipeline.
                pl.BlockSpec((TK, TN), lambda i, j, k: (k, j)),              # (K, N) weight
                pl.BlockSpec((KB_PER_STEP, 1, TN), lambda i, j, k: (k, 0, j)),  # scales
                pl.BlockSpec((1, TN), lambda i, j, k: (0, j)),               # bias
            ],
            out_specs=pl.BlockSpec((TM, TN), lambda i, j, k: (i, j)),
            scratch_shapes=[pltpu.VMEM((TM, TN), jnp.float32)],
        ),
        compiler_params=pltpu.CompilerParams(
            dimension_semantics=("parallel", "parallel", "arbitrary"),
            vmem_limit_bytes=int(vmem_limit),
        ),
    )(x2, wt_q, scale_rows, bias_row)

    if M_pad != M:
        out = out[:M]
    return out.reshape(orig_shape[:-1] + (N,))


# --------------------------------------------------------------------------------------
# Test harness
# --------------------------------------------------------------------------------------
def _make_fp8_block_quant_weight(key, out_features, in_features):
    """Deterministically build an fp8(e4m3) block-quantized weight + per-block scales,
    mirroring LinearDeepSeekV3.__init__ parameter shapes."""
    w = jax.random.normal(key, (out_features, in_features), dtype=jnp.float32) * 0.05
    so = (out_features + BLOCK_SIZE - 1) // BLOCK_SIZE
    si = (in_features + BLOCK_SIZE - 1) // BLOCK_SIZE
    w_blocks = w.reshape(so, BLOCK_SIZE, si, BLOCK_SIZE)
    amax = jnp.max(jnp.abs(w_blocks), axis=(1, 3))
    scale = jnp.maximum(amax, 1e-12) / 448.0                      # e4m3 max normal
    scale_b = jnp.repeat(jnp.repeat(scale, BLOCK_SIZE, 0), BLOCK_SIZE, 1)
    w_q_fp8 = (w / scale_b).astype(jnp.float8_e4m3fn)             # stored fp8 weight
    return w_q_fp8, scale.astype(jnp.float32)


if __name__ == "__main__":
    # Small shapes consistent with the module: batch=2, seq=4, in=256, out=256.
    B, S, IN, OUT = 2, 4, 256, 256
    key = jax.random.PRNGKey(0)
    kx, kw, kbias = jax.random.split(key, 3)

    x = jax.random.normal(kx, (B, S, IN), dtype=jnp.float32).astype(jnp.bfloat16)
    w_fp8, w_scale = _make_fp8_block_quant_weight(kw, OUT, IN)
    bias = jax.random.normal(kbias, (OUT,), dtype=jnp.float32) * 0.1

    # One-time load-time repack (fp8 kept in HBM if the device can consume it).
    wt, scale_rows, bias_row = prepare_deepseek_v3_linear(w_fp8, w_scale, bias)

    y = jax.block_until_ready(linear_deepseek_v3_pallas(x, wt, scale_rows, bias_row))

    # Reference: dequantize the full weight and do a plain linear.
    scale_b = jnp.repeat(jnp.repeat(w_scale, BLOCK_SIZE, 0), BLOCK_SIZE, 1)
    w_deq = w_fp8.astype(jnp.float32) * scale_b
    y_ref = (x.reshape(-1, IN).astype(jnp.float32) @ w_deq.T + bias).reshape(B, S, OUT)

    assert y.shape == (B, S, OUT) and y.dtype == x.dtype
    err = float(jnp.max(jnp.abs(y.astype(jnp.float32) - y_ref)))
    if not jnp.allclose(y.astype(jnp.float32), y_ref, rtol=2e-2, atol=2e-2):
        raise AssertionError(f"Pallas kernel mismatch vs reference (max abs err {err:.4e})")

    print("KERNEL_OK")
</pallas_src>

<mosaic_0001>
module attributes {stable_mosaic.version = 11 : i64} {
  func.func @_fp8_probe_kernel(%arg0: memref<8x128xf8E4M3FN, #tpu.memory_space<vmem>>, %arg1: memref<8x128xbf16, #tpu.memory_space<vmem>>) attributes {dimension_semantics = [], scalar_prefetch = 0 : i64, scratch_operands = 0 : i64, tpu.core_type = #tpu.core_type<tc>} {
    %c0 = arith.constant 0 : index
    %c0_0 = arith.constant 0 : index
    %0 = vector.load %arg0[%c0, %c0_0] : memref<8x128xf8E4M3FN, #tpu.memory_space<vmem>>, vector<8x128xf8E4M3FN>
    %1 = arith.extf %0 : vector<8x128xf8E4M3FN> to vector<8x128xbf16>
    %c0_1 = arith.constant 0 : index
    %c0_2 = arith.constant 0 : index
    %2 = vector.load %arg1[%c0_1, %c0_2] : memref<8x128xbf16, #tpu.memory_space<vmem>>, vector<8x128xbf16>
    tpu.vector_store %arg1[%c0_1, %c0_2], %1 {strides = array<i32>} : memref<8x128xbf16, #tpu.memory_space<vmem>>, vector<8x128xbf16>,
    return
  }
}

module attributes {stable_mosaic.version = 11 : i64} {
  func.func @_fp8_linear_kernel(%arg0: i32, %arg1: i32, %arg2: i32, %arg3: memref<16x256xbf16, #tpu.memory_space<vmem>>, %arg4: memref<256x256xbf16, #tpu.memory_space<vmem>>, %arg5: memref<2x1x256xf32, #tpu.memory_space<vmem>>, %arg6: memref<1x256xf32, #tpu.memory_space<vmem>>, %arg7: memref<16x256xbf16, #tpu.memory_space<vmem>>, %arg8: memref<16x256xf32, #tpu.memory_space<vmem>>) attributes {dimension_semantics = [#tpu.dimension_semantics<parallel>, #tpu.dimension_semantics<parallel>, #tpu.dimension_semantics<arbitrary>], iteration_bounds = array<i64: 1, 1, 1>, scalar_prefetch = 0 : i64, scratch_operands = 1 : i64, tpu.core_type = #tpu.core_type<tc>, window_params = [{transform_indices = @transform_0, window_bounds = array<i64: 16, 256>}, {transform_indices = @transform_1, window_bounds = array<i64: 256, 256>}, {transform_indices = @transform_2, window_bounds = array<i64: 2, 1, 256>}, {transform_indices = @transform_3, window_bounds = array<i64: 1, 256>}, {transform_indices = @transform_4, window_bounds = array<i64: 16, 256>}]} {
    %c0_i32 = arith.constant 0 : i32
    %0 = arith.cmpi eq, %arg2, %c0_i32 : i32
    %1 = arith.extui %0 : i1 to i32
    %c0_i32_0 = arith.constant 0 : i32
    %2 = arith.cmpi ne, %1, %c0_i32_0 : i32
    scf.if %2 {
      %cst_19 = arith.constant 0.000000e+00 : f32
      %24 = vector.broadcast %cst_19 : f32 to vector<16x256xf32>
      %c0_20 = arith.constant 0 : index
      %c0_21 = arith.constant 0 : index
      %25 = vector.load %arg8[%c0_20, %c0_21] : memref<16x256xf32, #tpu.memory_space<vmem>>, vector<16x256xf32>
      tpu.vector_store %arg8[%c0_20, %c0_21], %24 {strides = array<i32>} : memref<16x256xf32, #tpu.memory_space<vmem>>, vector<16x256xf32>,
    } else {
    }
    %c0 = arith.constant 0 : index
    %c0_1 = arith.constant 0 : index
    %3 = vector.load %arg3[%c0, %c0_1] : memref<16x256xbf16, #tpu.memory_space<vmem>>, vector<16x128xbf16>
    %c0_2 = arith.constant 0 : index
    %c0_3 = arith.constant 0 : index
    %4 = vector.load %arg4[%c0_2, %c0_3] : memref<256x256xbf16, #tpu.memory_space<vmem>>, vector<128x256xbf16>
    %cst = arith.constant dense<0.000000e+00> : vector<16x256xf32>
    %5 = tpu.matmul %3, %4, %cst {dimension_numbers = #tpu.dot_dimension_numbers<[1], [0], [0], [1], [0, 0, 1, 1], [], []>} : vector<16x128xbf16>, vector<128x256xbf16>, vector<16x256xf32> -> vector<16x256xf32>
    %c0_4 = arith.constant 0 : index
    %c0_5 = arith.constant 0 : index
    %c0_6 = arith.constant 0 : index
    %6 = vector.load %arg5[%c0_4, %c0_5, %c0_6] : memref<2x1x256xf32, #tpu.memory_space<vmem>>, vector<1x1x256xf32>
    %7 = vector.shape_cast %6 : vector<1x1x256xf32> to vector<1x256xf32>
    %8 = vector.broadcast %7 : vector<1x256xf32> to vector<16x256xf32>
    %9 = arith.mulf %8, %5 : vector<16x256xf32>
    %c0_7 = arith.constant 0 : index
    %c128 = arith.constant 128 : index
    %10 = vector.load %arg3[%c0_7, %c128] : memref<16x256xbf16, #tpu.memory_space<vmem>>, vector<16x128xbf16>
    %c128_8 = arith.constant 128 : index
    %c0_9 = arith.constant 0 : index
    %11 = vector.load %arg4[%c128_8, %c0_9] : memref<256x256xbf16, #tpu.memory_space<vmem>>, vector<128x256xbf16>
    %cst_10 = arith.constant dense<0.000000e+00> : vector<16x256xf32>
    %12 = tpu.matmul %10, %11, %cst_10 {dimension_numbers = #tpu.dot_dimension_numbers<[1], [0], [0], [1], [0, 0, 1, 1], [], []>} : vector<16x128xbf16>, vector<128x256xbf16>, vector<16x256xf32> -> vector<16x256xf32>
    %c1 = arith.constant 1 : index
    %c0_11 = arith.constant 0 : index
    %c0_12 = arith.constant 0 : index
    %13 = vector.load %arg5[%c1, %c0_11, %c0_12] : memref<2x1x256xf32, #tpu.memory_space<vmem>>, vector<1x1x256xf32>
    %14 = vector.shape_cast %13 : vector<1x1x256xf32> to vector<1x256xf32>
    %15 = vector.broadcast %14 : vector<1x256xf32> to vector<16x256xf32>
    %16 = arith.mulf %15, %12 : vector<16x256xf32>
    %17 = arith.addf %9, %16 : vector<16x256xf32>
    %c0_13 = arith.constant 0 : index
    %c0_14 = arith.constant 0 : index
    %18 = vector.load %arg8[%c0_13, %c0_14] : memref<16x256xf32, #tpu.memory_space<vmem>>, vector<16x256xf32>
    %19 = arith.addf %18, %17 : vector<16x256xf32>
    %c0_15 = arith.constant 0 : index
    %c0_16 = arith.constant 0 : index
    %20 = vector.load %arg8[%c0_15, %c0_16] : memref<16x256xf32, #tpu.memory_space<vmem>>, vector<16x256xf32>
    tpu.vector_store %arg8[%c0_15, %c0_16], %19 {strides = array<i32>} : memref<16x256xf32, #tpu.memory_space<vmem>>, vector<16x256xf32>,
    %c0_i32_17 = arith.constant 0 : i32
    %21 = arith.cmpi eq, %arg2, %c0_i32_17 : i32
    %22 = arith.extui %21 : i1 to i32
    %c0_i32_18 = arith.constant 0 : i32
    %23 = arith.cmpi ne, %22, %c0_i32_18 : i32
    scf.if %23 {
      %c0_19 = arith.constant 0 : index
      %c0_20 = arith.constant 0 : index
      %24 = vector.load %arg8[%c0_19, %c0_20] : memref<16x256xf32, #tpu.memory_space<vmem>>, vector<16x256xf32>
      %c0_21 = arith.constant 0 : index
      %c0_22 = arith.constant 0 : index
      %25 = vector.load %arg6[%c0_21, %c0_22] : memref<1x256xf32, #tpu.memory_space<vmem>>, vector<1x256xf32>
      %26 = vector.broadcast %25 : vector<1x256xf32> to vector<16x256xf32>
      %27 = arith.addf %24, %26 : vector<16x256xf32>
      %28 = arith.truncf %27 : vector<16x256xf32> to vector<16x256xbf16>
      %c0_23 = arith.constant 0 : index
      %c0_24 = arith.constant 0 : index
      %29 = vector.load %arg7[%c0_23, %c0_24] : memref<16x256xbf16, #tpu.memory_space<vmem>>, vector<16x256xbf16>
      tpu.vector_store %arg7[%c0_23, %c0_24], %28 {strides = array<i32>} : memref<16x256xbf16, #tpu.memory_space<vmem>>, vector<16x256xbf16>,
    } else {
    }
    return
  }
  func.func @transform_0(%arg0: i32, %arg1: i32, %arg2: i32) -> (i32, i32) {
    %c0_i32 = arith.constant 0 : i32
    return %arg0, %arg2 : i32, i32
  }
  func.func @transform_1(%arg0: i32, %arg1: i32, %arg2: i32) -> (i32, i32) {
    %c0_i32 = arith.constant 0 : i32
    return %arg2, %arg1 : i32, i32
  }
  func.func @transform_2(%arg0: i32, %arg1: i32, %arg2: i32) -> (i32, i32, i32) {
    %c0_i32 = arith.constant 0 : i32
    %c0_i32_0 = arith.constant 0 : i32
    return %arg2, %c0_i32, %arg1 : i32, i32, i32
  }
  func.func @transform_3(%arg0: i32, %arg1: i32, %arg2: i32) -> (i32, i32) {
    %c0_i32 = arith.constant 0 : i32
    %c0_i32_0 = arith.constant 0 : i32
    return %c0_i32, %arg1 : i32, i32
  }
  func.func @transform_4(%arg0: i32, %arg1: i32, %arg2: i32) -> (i32, i32) {
    %c0_i32 = arith.constant 0 : i32
    return %arg0, %arg1 : i32, i32
  }
}

</mosaic_0001>

<llo_original>
// kernel: tpu_custom_call.1
$region0: #{tpu_custom_call.1}
  #allocation0 [shape = 'u32[]', space=smem, size = 0x4, offset = 0x4, fixed_abs, tag = 'smem constant byte address 0x4 - core index']
  #allocation1 [shape = 'u32[144,128]{1,0:T(1,128)}', space=vmem, size = 0x12000, scoped, tag = 'internal scratch']
  %s0 = inlined_call_operand.hbm [shape: f8e4m3fn[8,128], index: 0, kind: input, shape index: {}]
  %s1 = inlined_call_operand.hbm [shape: bf16[8,128], index: 1, kind: output, shape index: {}]
  %s2 = sld [smem:[#allocation0]]
  $region18: #{tpu_custom_call.1} parent=0
    _
  %s4 = ssub.s32 1, %s2
  %s5 = scalar_select 0, %s4, %s2
  $region1: #{tpu_custom_call.1} parent=0
    #allocation2 [shape = 'u8[1024]{0}', space=vmem, size = 0x400, scoped, tag = 'input window, operand 0, single buffered']
    #allocation3 [shape = 's32[1]{0}', space=sflag, size = 0x4, scoped, tag = 'scoped memory for tpu_custom_call.1']
    #allocation4 [shape = 's32[1]{0}', space=sflag, size = 0x4, scoped, tag = 'scoped memory for tpu_custom_call.1']
    #allocation5 [shape = 'u8[2048]{0}', space=vmem, size = 0x800, scoped, tag = 'output window, operand 0, single buffered']
    %6 = vsyncpa [#allocation3], 0
    %7 = vsyncpa [#allocation4], 0
    // Predicated region
    $region2: #{tpu_custom_call.1} parent=1 // pred_check
      _
    $region3: #{tpu_custom_call.1} parent=1 // pred_check_branch
      %9 = sbr.rel (0) target = $region5
    $region4: #{tpu_custom_call.1} parent=1 // pred_region
      %s11 = ssub.s32 32, 32
      %12 = vsyncadd [#allocation3], %s11
      %s14 = sshll.u32 [#allocation2], 4
      %s15 = int_to_ptr.vmem [resolvable:$true] %s14
      %17 = dma.hbm_to_vmem [thread:$0]  %s0, 32, %s15, [#allocation3]
    $region5: #{tpu_custom_call.1} parent=1 // pred_fallthru
      _
    // Predicated region
    $region6: #{tpu_custom_call.1} parent=1 // pred_check
      _
    $region7: #{tpu_custom_call.1} parent=1 // pred_check_branch
      %19 = sbr.rel (0) target = $region9
    $region8: #{tpu_custom_call.1} parent=1 // pred_region
      %20 = dma.done [#allocation3], 32
    $region9: #{tpu_custom_call.1} parent=1 // pred_fallthru
      _
    %v21 = vld [vmem:[#allocation2] sm:$0x3]
    %v22 = vunpack.c.l.f8e4m3fn %v21
    %23 = vst [vmem:[#allocation5] sm:$0xf] %v22
    // Predicated region
    $region10: #{tpu_custom_call.1} parent=1 // pred_check
      _
    $region11: #{tpu_custom_call.1} parent=1 // pred_check_branch
      %25 = sbr.rel (0) target = $region13
    $region12: #{tpu_custom_call.1} parent=1 // pred_region
      %s27 = ssub.s32 64, 64
      %28 = vsyncadd [#allocation4], %s27
      %s30 = sshll.u32 [#allocation5], 4
      %s31 = int_to_ptr.vmem [resolvable:$true] %s30
      %33 = dma.vmem_to_hbm [thread:$0]  %s31, 64, %s1, [#allocation4]
    $region13: #{tpu_custom_call.1} parent=1 // pred_fallthru
      _
    // Predicated region
    $region14: #{tpu_custom_call.1} parent=1 // pred_check
      _
    $region15: #{tpu_custom_call.1} parent=1 // pred_check_branch
      %35 = sbr.rel (0) target = $region17
    $region16: #{tpu_custom_call.1} parent=1 // pred_region
      %36 = dma.done [#allocation4], 64
    $region17: #{tpu_custom_call.1} parent=1 // pred_fallthru
      _
    %37 = vsyncpa [#allocation3], 1
    %38 = vsyncpa [#allocation4], 1

// kernel: linear_deepseek_v3_pallas.1
$region0: #{linear_deepseek_v3_pallas.1}
  #allocation0 [shape = 'u32[]', space=smem, size = 0x4, offset = 0x4, fixed_abs, tag = 'smem constant byte address 0x4 - core index']
  #allocation1 [shape = 'u32[144,128]{1,0:T(1,128)}', space=vmem, size = 0x12000, scoped, tag = 'internal scratch']
  #allocation2 [shape = 'f32[16,256]{1,0:T(8,128)}', space=vmem, size = 0x4000, scoped, tag = 'scratch operand']
  %s0 = inlined_call_operand.vmem [shape: bf16[16,256], index: 0, kind: input, shape index: {}]
  %s1 = inlined_call_operand.hbm [shape: bf16[256,256], index: 1, kind: input, shape index: {}]
  %s2 = inlined_call_operand.vmem [shape: f32[2,1,256], index: 2, kind: input, shape index: {}]
  %s3 = inlined_call_operand.vmem [shape: f32[1,256], index: 3, kind: input, shape index: {}]
  %s4 = inlined_call_operand.vmem [shape: bf16[16,256], index: 4, kind: output, shape index: {}]
  %s5 = sld [smem:[#allocation0]]
  $region38: #{linear_deepseek_v3_pallas.1} parent=0
    _
  %s7 = ssub.s32 1, %s5
  %s8 = scalar_select 0, %s7, %s5
  $region1: #{linear_deepseek_v3_pallas.1} parent=0
    #allocation3 [shape = 'u8[131072]{0}', space=vmem, size = 0x20000, scoped, tag = 'input window, operand 1, single buffered']
    #allocation4 [shape = 's32[1]{0}', space=sflag, size = 0x4, scoped, tag = 'scoped memory for linear_deepseek_v3_pallas.1']
    %9 = vsyncpa [#allocation4], 0
    // Predicated region
    $region2: #{linear_deepseek_v3_pallas.1} parent=1 // pred_check
      _
    $region3: #{linear_deepseek_v3_pallas.1} parent=1 // pred_check_branch
      %11 = sbr.rel (0) target = $region5
    $region4: #{linear_deepseek_v3_pallas.1} parent=1 // pred_region
      _
    $region5: #{linear_deepseek_v3_pallas.1} parent=1 // pred_fallthru
      _
    // Predicated region
    $region6: #{linear_deepseek_v3_pallas.1} parent=1 // pred_check
      _
    $region7: #{linear_deepseek_v3_pallas.1} parent=1 // pred_check_branch
      %13 = sbr.rel (0) target = $region9
    $region8: #{linear_deepseek_v3_pallas.1} parent=1 // pred_region
      %s15 = ssub.s32 4096, 4096
      %16 = vsyncadd [#allocation4], %s15
      %s17 = sshll.u32 [#allocation3], 4
      %s18 = int_to_ptr.vmem [resolvable:$true] %s17
      %23 = dma.hbm_to_vmem [thread:$0]  %s1, 4096, %s18, [#allocation4], 128, 128, 8
    $region9: #{linear_deepseek_v3_pallas.1} parent=1 // pred_fallthru
      _
    // Predicated region
    $region10: #{linear_deepseek_v3_pallas.1} parent=1 // pred_check
      _
    $region11: #{linear_deepseek_v3_pallas.1} parent=1 // pred_check_branch
      %25 = sbr.rel (0) target = $region13
    $region12: #{linear_deepseek_v3_pallas.1} parent=1 // pred_region
      _
    $region13: #{linear_deepseek_v3_pallas.1} parent=1 // pred_fallthru
      _
    // Predicated region
    $region14: #{linear_deepseek_v3_pallas.1} parent=1 // pred_check
      _
    $region15: #{linear_deepseek_v3_pallas.1} parent=1 // pred_check_branch
      %27 = sbr.rel (0) target = $region17
    $region16: #{linear_deepseek_v3_pallas.1} parent=1 // pred_region
      _
    $region17: #{linear_deepseek_v3_pallas.1} parent=1 // pred_fallthru
      _
    // Predicated region
    $region18: #{linear_deepseek_v3_pallas.1} parent=1 // pred_check
      _
    $region19: #{linear_deepseek_v3_pallas.1} parent=1 // pred_check_branch
      %29 = sbr.rel (0) target = $region21
    $region20: #{linear_deepseek_v3_pallas.1} parent=1 // pred_region
      %30 = dma.done [#allocation4], 4096
    $region21: #{linear_deepseek_v3_pallas.1} parent=1 // pred_fallthru
      _
    %p32 = scmp.eq.s32.totalorder 0, 0
    // Predicated region
    $region22: #{linear_deepseek_v3_pallas.1} parent=1 // pred_check
      %p33 = pneg %p32
    $region23: #{linear_deepseek_v3_pallas.1} parent=1 // pred_check_branch
      %35 = sbr.rel (%p33) target = $region25
    $region24: #{linear_deepseek_v3_pallas.1} parent=1 // pred_region
      %36 = vst [vmem:[#allocation2] sm:$0xff] 0.0
      %37 = vst [vmem:[#allocation2 + $0x8] sm:$0xff] 0.0
      %38 = vst [vmem:[#allocation2 + $0x10] sm:$0xff] 0.0
      %39 = vst [vmem:[#allocation2 + $0x18] sm:$0xff] 0.0
    $region25: #{linear_deepseek_v3_pallas.1} parent=1 // pred_fallthru
      _
    %v40 = vld [vmem:[%s0] sm:$0xf]
    %v41 = vld [vmem:[%s0 + $0x8] sm:$0xf]
    %v42 = vld [vmem:[#allocation3] sm:$0xff]
    %v43 = vld [vmem:[#allocation3 + $0x8] sm:$0xff]
    %v44 = vld [vmem:[#allocation3 + $0x10] sm:$0xff]
    %v45 = vld [vmem:[#allocation3 + $0x18] sm:$0xff]
    %v46 = vld [vmem:[#allocation3 + $0x20] sm:$0xff]
    %v47 = vld [vmem:[#allocation3 + $0x28] sm:$0xff]
    %v48 = vld [vmem:[#allocation3 + $0x30] sm:$0xff]
    %v49 = vld [vmem:[#allocation3 + $0x38] sm:$0xff]
    %v50 = vld [vmem:[#allocation3 + $0x40] sm:$0xff]
    %v51 = vld [vmem:[#allocation3 + $0x48] sm:$0xff]
    %v52 = vld [vmem:[#allocation3 + $0x50] sm:$0xff]
    %v53 = vld [vmem:[#allocation3 + $0x58] sm:$0xff]
    %v54 = vld [vmem:[#allocation3 + $0x60] sm:$0xff]
    %v55 = vld [vmem:[#allocation3 + $0x68] sm:$0xff]
    %v56 = vld [vmem:[#allocation3 + $0x70] sm:$0xff]
    %v57 = vld [vmem:[#allocation3 + $0x78] sm:$0xff]
    %v60 = vunpack.c.l.b16 %v40
    %v61 = vunpack.c.l.b16 %v41
    %v62 = vpack.c.b16 %v61, %v60
    %v80 = vunpack.c.l.b16 %v42
    %v81 = vunpack.c.h.b16 %v42
    %v82 = vunpack.c.l.b16 %v43
    %v83 = vunpack.c.h.b16 %v43
    %v84 = vunpack.c.l.b16 %v44
    %v85 = vunpack.c.h.b16 %v44
    %v86 = vunpack.c.l.b16 %v45
    %v87 = vunpack.c.h.b16 %v45
    %v88 = vunpack.c.l.b16 %v46
    %v89 = vunpack.c.h.b16 %v46
    %v90 = vunpack.c.l.b16 %v47
    %v91 = vunpack.c.h.b16 %v47
    %v92 = vunpack.c.l.b16 %v48
    %v93 = vunpack.c.h.b16 %v48
    %v94 = vunpack.c.l.b16 %v49
    %v95 = vunpack.c.h.b16 %v49
    %v96 = vunpack.c.l.b16 %v50
    %v97 = vunpack.c.h.b16 %v50
    %v98 = vunpack.c.l.b16 %v51
    %v99 = vunpack.c.h.b16 %v51
    %v100 = vunpack.c.l.b16 %v52
    %v101 = vunpack.c.h.b16 %v52
    %v102 = vunpack.c.l.b16 %v53
    %v103 = vunpack.c.h.b16 %v53
    %v104 = vunpack.c.l.b16 %v54
    %v105 = vunpack.c.h.b16 %v54
    %v106 = vunpack.c.l.b16 %v55
    %v107 = vunpack.c.h.b16 %v55
    %v108 = vunpack.c.l.b16 %v56
    %v109 = vunpack.c.h.b16 %v56
    %v110 = vunpack.c.l.b16 %v57
    %v111 = vunpack.c.h.b16 %v57
    %v112 = vpack.c.b16 %v82, %v80
    %v113 = vpack.c.b16 %v83, %v81
    %v114 = vpack.c.b16 %v86, %v84
    %v115 = vpack.c.b16 %v87, %v85
    %v116 = vpack.c.b16 %v90, %v88
    %v117 = vpack.c.b16 %v91, %v89
    %v118 = vpack.c.b16 %v94, %v92
    %v119 = vpack.c.b16 %v95, %v93
    %v120 = vpack.c.b16 %v98, %v96
    %v121 = vpack.c.b16 %v99, %v97
    %v122 = vpack.c.b16 %v102, %v100
    %v123 = vpack.c.b16 %v103, %v101
    %v124 = vpack.c.b16 %v106, %v104
    %v125 = vpack.c.b16 %v107, %v105
    %v126 = vpack.c.b16 %v110, %v108
    %v127 = vpack.c.b16 %v111, %v109
    %144 = vmatprep.subr.bf16.mxu0 %v113
    %145 = vmatpush1.bf16.msra.mxu0 %v112
    %146 = vmatprep.subr.bf16.mxu0 %v115
    %147 = vmatpush1.bf16.msra.mxu0 %v114
    %148 = vmatprep.subr.bf16.mxu0 %v117
    %149 = vmatpush1.bf16.msra.mxu0 %v116
    %150 = vmatprep.subr.bf16.mxu0 %v119
    %151 = vmatpush1.bf16.msra.mxu0 %v118
    %152 = vmatprep.subr.bf16.mxu0 %v121
    %153 = vmatpush1.bf16.msra.mxu0 %v120
    %154 = vmatprep.subr.bf16.mxu0 %v123
    %155 = vmatpush1.bf16.msra.mxu0 %v122
    %156 = vmatprep.subr.bf16.mxu0 %v125
    %157 = vmatpush1.bf16.msra.mxu0 %v124
    %158 = vmatprep.subr.bf16.mxu0 %v127
    %159 = vmatpush1.bf16.msra.mxu0 %v126
    %160 = vmatprep.subr.bf16.mxu0 0
    %161 = vmatpush1.bf16.msra.mxu0 0
    %162 = vmatprep.subr.bf16.mxu0 0
    %163 = vmatpush1.bf16.msra.mxu0 0
    %164 = vmatprep.subr.bf16.mxu0 0
    %165 = vmatpush1.bf16.msra.mxu0 0
    %166 = vmatprep.subr.bf16.mxu0 0
    %167 = vmatpush1.bf16.msra.mxu0 0
    %168 = vmatprep.subr.bf16.mxu0 0
    %169 = vmatpush1.bf16.msra.mxu0 0
    %170 = vmatprep.subr.bf16.mxu0 0
    %171 = vmatpush1.bf16.msra.mxu0 0
    %172 = vmatprep.subr.bf16.mxu0 0
    %173 = vmatpush1.bf16.msra.mxu0 0
    %174 = vmatprep.subr.bf16.mxu0 0
    %175 = vmatpush1.bf16.msra.mxu0 0
    %176 = vmatprep.mubr.bf16.mxu0 0
    %177 = vmatmul.mubr.bf16.gmra.mrb[0].mxu0 %v62
    %v178 = vpop.f32.mrb[0].mxu0
    %v179 = vadd.f32 0.0, %v178
    %v180 = vpop.f32.mrb[0].mxu0
    %v181 = vadd.f32 0.0, %v180
    %v182 = vpop.f32.mrb[0].mxu0
    %v183 = vadd.f32 0.0, %v182
    %v184 = vpop.f32.mrb[0].mxu0
    %v185 = vadd.f32 0.0, %v184
    %186 = vdwg.mxu0
    %v187 = vld [vmem:[%s2] sm:$0x3]
    %v189 = vlaneseq
    %v190 = vshrl.u32 %v189, 7
    %v191 = vsub.s32 0, %v190
    %v192 = vrot.slane %v187, %v191
    %v193 = vlaneseq
    %v194 = vshrl.u32 %v193, 7
    %v195 = vsub.s32 1, %v194
    %v196 = vrot.slane %v187, %v195
    %v199 = vmul.f32 %v192, %v179
    %v200 = vmul.f32 %v196, %v181
    %v201 = vmul.f32 %v192, %v183
    %v202 = vmul.f32 %v196, %v185
    %v203 = vld [vmem:[%s0 + $0x4] sm:$0xf]
    %v204 = vld [vmem:[%s0 + $0xc] sm:$0xf]
    %v205 = vld [vmem:[#allocation3 + $0x80] sm:$0xff]
    %v206 = vld [vmem:[#allocation3 + $0x88] sm:$0xff]
    %v207 = vld [vmem:[#allocation3 + $0x90] sm:$0xff]
    %v208 = vld [vmem:[#allocation3 + $0x98] sm:$0xff]
    %v209 = vld [vmem:[#allocation3 + $0xa0] sm:$0xff]
    %v210 = vld [vmem:[#allocation3 + $0xa8] sm:$0xff]
    %v211 = vld [vmem:[#allocation3 + $0xb0] sm:$0xff]
    %v212 = vld [vmem:[#allocation3 + $0xb8] sm:$0xff]
    %v213 = vld [vmem:[#allocation3 + $0xc0] sm:$0xff]
    %v214 = vld [vmem:[#allocation3 + $0xc8] sm:$0xff]
    %v215 = vld [vmem:[#allocation3 + $0xd0] sm:$0xff]
    %v216 = vld [vmem:[#allocation3 + $0xd8] sm:$0xff]
    %v217 = vld [vmem:[#allocation3 + $0xe0] sm:$0xff]
    %v218 = vld [vmem:[#allocation3 + $0xe8] sm:$0xff]
    %v219 = vld [vmem:[#allocation3 + $0xf0] sm:$0xff]
    %v220 = vld [vmem:[#allocation3 + $0xf8] sm:$0xff]
    %v223 = vunpack.c.l.b16 %v203
    %v224 = vunpack.c.l.b16 %v204
    %v225 = vpack.c.b16 %v224, %v223
    %v243 = vunpack.c.l.b16 %v205
    %v244 = vunpack.c.h.b16 %v205
    %v245 = vunpack.c.l.b16 %v206
    %v246 = vunpack.c.h.b16 %v206
    %v247 = vunpack.c.l.b16 %v207
    %v248 = vunpack.c.h.b16 %v207
    %v249 = vunpack.c.l.b16 %v208
    %v250 = vunpack.c.h.b16 %v208
    %v251 = vunpack.c.l.b16 %v209
    %v252 = vunpack.c.h.b16 %v209
    %v253 = vunpack.c.l.b16 %v210
    %v254 = vunpack.c.h.b16 %v210
    %v255 = vunpack.c.l.b16 %v211
    %v256 = vunpack.c.h.b16 %v211
    %v257 = vunpack.c.l.b16 %v212
    %v258 = vunpack.c.h.b16 %v212
    %v259 = vunpack.c.l.b16 %v213
    %v260 = vunpack.c.h.b16 %v213
    %v261 = vunpack.c.l.b16 %v214
    %v262 = vunpack.c.h.b16 %v214
    %v263 = vunpack.c.l.b16 %v215
    %v264 = vunpack.c.h.b16 %v215
    %v265 = vunpack.c.l.b16 %v216
    %v266 = vunpack.c.h.b16 %v216
    %v267 = vunpack.c.l.b16 %v217
    %v268 = vunpack.c.h.b16 %v217
    %v269 = vunpack.c.l.b16 %v218
    %v270 = vunpack.c.h.b16 %v218
    %v271 = vunpack.c.l.b16 %v219
    %v272 = vunpack.c.h.b16 %v219
    %v273 = vunpack.c.l.b16 %v220
    %v274 = vunpack.c.h.b16 %v220
    %v275 = vpack.c.b16 %v245, %v243
    %v276 = vpack.c.b16 %v246, %v244
    %v277 = vpack.c.b16 %v249, %v247
    %v278 = vpack.c.b16 %v250, %v248
    %v279 = vpack.c.b16 %v253, %v251
    %v280 = vpack.c.b16 %v254, %v252
    %v281 = vpack.c.b16 %v257, %v255
    %v282 = vpack.c.b16 %v258, %v256
    %v283 = vpack.c.b16 %v261, %v259
    %v284 = vpack.c.b16 %v262, %v260
    %v285 = vpack.c.b16 %v265, %v263
    %v286 = vpack.c.b16 %v266, %v264
    %v287 = vpack.c.b16 %v269, %v267
    %v288 = vpack.c.b16 %v270, %v268
    %v289 = vpack.c.b16 %v273, %v271
    %v290 = vpack.c.b16 %v274, %v272
    %307 = vmatprep.subr.bf16.mxu0 %v276
    %308 = vmatpush1.bf16.msra.mxu0 %v275
    %309 = vmatprep.subr.bf16.mxu0 %v278
    %310 = vmatpush1.bf16.msra.mxu0 %v277
    %311 = vmatprep.subr.bf16.mxu0 %v280
    %312 = vmatpush1.bf16.msra.mxu0 %v279
    %313 = vmatprep.subr.bf16.mxu0 %v282
    %314 = vmatpush1.bf16.msra.mxu0 %v281
    %315 = vmatprep.subr.bf16.mxu0 %v284
    %316 = vmatpush1.bf16.msra.mxu0 %v283
    %317 = vmatprep.subr.bf16.mxu0 %v286
    %318 = vmatpush1.bf16.msra.mxu0 %v285
    %319 = vmatprep.subr.bf16.mxu0 %v288
    %320 = vmatpush1.bf16.msra.mxu0 %v287
    %321 = vmatprep.subr.bf16.mxu0 %v290
    %322 = vmatpush1.bf16.msra.mxu0 %v289
    %323 = vmatprep.subr.bf16.mxu0 0
    %324 = vmatpush1.bf16.msra.mxu0 0
    %325 = vmatprep.subr.bf16.mxu0 0
    %326 = vmatpush1.bf16.msra.mxu0 0
    %327 = vmatprep.subr.bf16.mxu0 0
    %328 = vmatpush1.bf16.msra.mxu0 0
    %329 = vmatprep.subr.bf16.mxu0 0
    %330 = vmatpush1.bf16.msra.mxu0 0
    %331 = vmatprep.subr.bf16.mxu0 0
    %332 = vmatpush1.bf16.msra.mxu0 0
    %333 = vmatprep.subr.bf16.mxu0 0
    %334 = vmatpush1.bf16.msra.mxu0 0
    %335 = vmatprep.subr.bf16.mxu0 0
    %336 = vmatpush1.bf16.msra.mxu0 0
    %337 = vmatprep.subr.bf16.mxu0 0
    %338 = vmatpush1.bf16.msra.mxu0 0
    %339 = vmatprep.mubr.bf16.mxu0 0
    %340 = vmatmul.mubr.bf16.gmra.mrb[0].mxu0 %v225
    %v341 = vpop.f32.mrb[0].mxu0
    %v342 = vadd.f32 0.0, %v341
    %v343 = vpop.f32.mrb[0].mxu0
    %v344 = vadd.f32 0.0, %v343
    %v345 = vpop.f32.mrb[0].mxu0
    %v346 = vadd.f32 0.0, %v345
    %v347 = vpop.f32.mrb[0].mxu0
    %v348 = vadd.f32 0.0, %v347
    %349 = vdwg.mxu0
    %s350 = scalar_lea.vmem %s2, 2
    %v351 = vld [vmem:[%s350] sm:$0x3]
    %v353 = vlaneseq
    %v354 = vshrl.u32 %v353, 7
    %v355 = vsub.s32 0, %v354
    %v356 = vrot.slane %v351, %v355
    %v357 = vlaneseq
    %v358 = vshrl.u32 %v357, 7
    %v359 = vsub.s32 1, %v358
    %v360 = vrot.slane %v351, %v359
    %v363 = vmul.f32 %v356, %v342
    %v364 = vmul.f32 %v360, %v344
    %v365 = vmul.f32 %v356, %v346
    %v366 = vmul.f32 %v360, %v348
    %v367 = vadd.f32 %v199, %v363
    %v368 = vadd.f32 %v200, %v364
    %v369 = vadd.f32 %v201, %v365
    %v370 = vadd.f32 %v202, %v366
    %v371 = vld [vmem:[#allocation2] sm:$0xff]
    %v372 = vld [vmem:[#allocation2 + $0x8] sm:$0xff]
    %v373 = vld [vmem:[#allocation2 + $0x10] sm:$0xff]
    %v374 = vld [vmem:[#allocation2 + $0x18] sm:$0xff]
    %v375 = vadd.f32 %v371, %v367
    %v376 = vadd.f32 %v372, %v368
    %v377 = vadd.f32 %v373, %v369
    %v378 = vadd.f32 %v374, %v370
    %379 = vst [vmem:[#allocation2] sm:$0xff] %v375
    %380 = vst [vmem:[#allocation2 + $0x8] sm:$0xff] %v376
    %381 = vst [vmem:[#allocation2 + $0x10] sm:$0xff] %v377
    %382 = vst [vmem:[#allocation2 + $0x18] sm:$0xff] %v378
    // Predicated region
    $region26: #{linear_deepseek_v3_pallas.1} parent=1 // pred_check
      %p383 = pneg %p32
    $region27: #{linear_deepseek_v3_pallas.1} parent=1 // pred_check_branch
      %385 = sbr.rel (%p383) target = $region29
    $region28: #{linear_deepseek_v3_pallas.1} parent=1 // pred_region
      %v386 = vld [vmem:[#allocation2] sm:$0xff]
      %v387 = vld [vmem:[#allocation2 + $0x8] sm:$0xff]
      %v388 = vld [vmem:[#allocation2 + $0x10] sm:$0xff]
      %v389 = vld [vmem:[#allocation2 + $0x18] sm:$0xff]
      %v390 = vld [vmem:[%s3] sm:$0x3]
      %v392 = vlaneseq
      %v393 = vshrl.u32 %v392, 7
      %v394 = vsub.s32 0, %v393
      %v395 = vrot.slane %v390, %v394
      %v396 = vlaneseq
      %v397 = vshrl.u32 %v396, 7
      %v398 = vsub.s32 1, %v397
      %v399 = vrot.slane %v390, %v398
      %v402 = vadd.f32 %v386, %v395
      %v403 = vadd.f32 %v387, %v399
      %v404 = vadd.f32 %v388, %v395
      %v405 = vadd.f32 %v389, %v399
      %v406 = vpack.c.bf16 %v404, %v402
      %v407 = vpack.c.bf16 %v405, %v403
      %v410 = vunpack.c.l.b16 %v406
      %v411 = vunpack.c.l.b16 %v407
      %v412 = vunpack.c.h.b16 %v406
      %v413 = vunpack.c.h.b16 %v407
      %v414 = vpack.c.b16 %v411, %v410
      %v415 = vpack.c.b16 %v413, %v412
      %418 = vst [vmem:[%s4] sm:$0xff] %v414
      %419 = vst [vmem:[%s4 + $0x8] sm:$0xff] %v415
    $region29: #{linear_deepseek_v3_pallas.1} parent=1 // pred_fallthru
      _
    // Predicated region
    $region30: #{linear_deepseek_v3_pallas.1} parent=1 // pred_check
      _
    $region31: #{linear_deepseek_v3_pallas.1} parent=1 // pred_check_branch
      %421 = sbr.rel (0) target = $region33
    $region32: #{linear_deepseek_v3_pallas.1} parent=1 // pred_region
      _
    $region33: #{linear_deepseek_v3_pallas.1} parent=1 // pred_fallthru
      _
    // Predicated region
    $region34: #{linear_deepseek_v3_pallas.1} parent=1 // pred_check
      _
    $region35: #{linear_deepseek_v3_pallas.1} parent=1 // pred_check_branch
      %423 = sbr.rel (0) target = $region37
    $region36: #{linear_deepseek_v3_pallas.1} parent=1 // pred_region
      _
    $region37: #{linear_deepseek_v3_pallas.1} parent=1 // pred_fallthru
      _
    %424 = vsyncpa [#allocation4], 1

</llo_original>
